<compile_context>
chip_gen: v7x
topology: tpu7x:2x2x1
jax: 0.10.0
libtpu: 0.0.40
codegen_flags: <defaults>
</compile_context>

<pallas_src>
import jax
import jax.numpy as jnp
from jax import lax
from jax.experimental import pallas as pl
from jax.experimental.pallas import tpu as pltpu


# ----------------------------- Pallas kernel -------------------------------

def lstm_encoder_kernel(x_ref, w_ref, b_ref, out_ref):
    """Whole-sequence LSTM + per-step batch mean, single invocation.

    x_ref   : (S, B, E)   time-major embeddings (whole sequence, VMEM resident)
    w_ref   : (E+H, 4H)   fused [w_ih^T ; w_hh^T], gate order (i, f, g, o)
    b_ref   : (1, 4H)     b_ih + b_hh
    out_ref : (S, H)      mean over batch of h_t for every t (written in VMEM,
                          flushed to HBM once at kernel end)
    """
    seq, batch, _ = x_ref.shape
    hidden = out_ref.shape[1]

    # Hoist constant operands out of the loop: loaded into vregs once.
    w = w_ref[...]                       # (E+H, 4H)
    b = b_ref[...]                       # (1, 4H)

    def step(t, carry):
        h, c = carry                                       # (B, H) each, in vregs
        x_t = x_ref[t]                                     # (B, E)
        xh = jnp.concatenate([x_t, h], axis=1)             # (B, E+H)
        gates = jnp.dot(xh, w, preferred_element_type=jnp.float32) + b   # (B, 4H)

        i_g = jax.nn.sigmoid(gates[:, 0 * hidden:1 * hidden])
        f_g = jax.nn.sigmoid(gates[:, 1 * hidden:2 * hidden])
        g_g = jnp.tanh(gates[:, 2 * hidden:3 * hidden])
        o_g = jax.nn.sigmoid(gates[:, 3 * hidden:4 * hidden])

        c_n = f_g * c + i_g * g_g
        h_n = o_g * jnp.tanh(c_n)

        # h.mean(dim=1): per time step, average over the batch axis.
        out_ref[pl.ds(t, 1), :] = jnp.mean(h_n, axis=0, keepdims=True)
        return h_n, c_n

    h0 = jnp.zeros((batch, hidden), jnp.float32)
    c0 = jnp.zeros((batch, hidden), jnp.float32)
    # seq is static -> fully unrolled; h/c stay in registers across steps.
    lax.fori_loop(0, seq, step, (h0, c0), unroll=True)


def lstm_encoder_pallas(x_tokens, embed_table, w_ih, w_hh, b_ih, b_hh):
    """x_tokens: (seq, batch) int32.  Returns (seq, hidden) float32."""
    seq, batch = x_tokens.shape
    embed_dim = embed_table.shape[1]
    hidden = w_hh.shape[1]

    # Glue: embedding gather (padding_idx=0 row is zero in the table).
    embeds = embed_table[x_tokens]                     # (S, B, E) f32
    # TODO(synk): for large vocab/seq, move the gather into the kernel via
    # scalar-prefetched token ids + a pl.Element row-gather BlockSpec.

    # Fused weight: gates = [x_t, h] @ [w_ih^T ; w_hh^T] + (b_ih + b_hh)
    w_cat = jnp.concatenate([jnp.transpose(w_ih), jnp.transpose(w_hh)], axis=0)  # (E+H, 4H)
    bias = (b_ih + b_hh)[None, :]                      # (1, 4H)

    out = pl.pallas_call(
        lstm_encoder_kernel,
        out_shape=jax.ShapeDtypeStruct((seq, hidden), jnp.float32),
        in_specs=[
            pl.BlockSpec(memory_space=pltpu.MemorySpace.VMEM),   # embeds (whole)
            pl.BlockSpec(memory_space=pltpu.MemorySpace.VMEM),   # fused weights
            pl.BlockSpec(memory_space=pltpu.MemorySpace.VMEM),   # fused bias
        ],
        out_specs=pl.BlockSpec(memory_space=pltpu.MemorySpace.VMEM),
    )(embeds, w_cat, bias)
    return out


# ------------------------- pure-JAX reference ------------------------------

def lstm_encoder_ref(x_tokens, embed_table, w_ih, w_hh, b_ih, b_hh):
    embeds = embed_table[x_tokens]                  # (seq, B, E)
    hidden = w_hh.shape[1]
    B = x_tokens.shape[1]
    h0 = jnp.zeros((B, hidden), jnp.float32)
    c0 = jnp.zeros((B, hidden), jnp.float32)

    def step(carry, x_t):
        h, c = carry
        gates = x_t @ w_ih.T + b_ih + h @ w_hh.T + b_hh
        i_g = jax.nn.sigmoid(gates[:, 0 * hidden:1 * hidden])
        f_g = jax.nn.sigmoid(gates[:, 1 * hidden:2 * hidden])
        g_g = jnp.tanh(gates[:, 2 * hidden:3 * hidden])
        o_g = jax.nn.sigmoid(gates[:, 3 * hidden:4 * hidden])
        c_n = f_g * c + i_g * g_g
        h_n = o_g * jnp.tanh(c_n)
        return (h_n, c_n), h_n

    _, hs = lax.scan(step, (h0, c0), embeds)        # hs: (seq, B, H)
    return hs.mean(axis=1)                          # (seq, H)


# --------------------------------- main -------------------------------------

if __name__ == "__main__":
    # Small, forward-consistent shapes.
    vocab_size = 20
    embed_dim = 16
    hidden_dim = 32
    seq_len = 8
    batch = 2

    key = jax.random.PRNGKey(0)
    k_emb, k_wih, k_whh, k_bih, k_bhh, k_x = jax.random.split(key, 6)

    # Embedding: (vocab_size + 1, embed_dim), normal(0, 0.01), padding_idx=0 -> zero row.
    embed_table = 0.01 * jax.random.normal(
        k_emb, (vocab_size + 1, embed_dim), dtype=jnp.float32)
    embed_table = embed_table.at[0].set(0.0)

    # LSTM params, PyTorch default init U(-1/sqrt(H), 1/sqrt(H)), gate order (i, f, g, o).
    bound = 1.0 / jnp.sqrt(jnp.float32(hidden_dim))
    w_ih = jax.random.uniform(k_wih, (4 * hidden_dim, embed_dim),
                              minval=-bound, maxval=bound, dtype=jnp.float32)
    w_hh = jax.random.uniform(k_whh, (4 * hidden_dim, hidden_dim),
                              minval=-bound, maxval=bound, dtype=jnp.float32)
    b_ih = jax.random.uniform(k_bih, (4 * hidden_dim,),
                              minval=-bound, maxval=bound, dtype=jnp.float32)
    b_hh = jax.random.uniform(k_bhh, (4 * hidden_dim,),
                              minval=-bound, maxval=bound, dtype=jnp.float32)

    # Token ids (seq, batch), 0 acts as padding index.
    x_tokens = jax.random.randint(k_x, (seq_len, batch), 0, vocab_size + 1,
                                  dtype=jnp.int32)

    # Note: self.fc_layers is defined but unused in forward(); not implemented.
    out = lstm_encoder_pallas(x_tokens, embed_table, w_ih, w_hh, b_ih, b_hh)
    out = jax.block_until_ready(out)

    ref = lstm_encoder_ref(x_tokens, embed_table, w_ih, w_hh, b_ih, b_hh)
    assert out.shape == (seq_len, hidden_dim)
    assert jnp.allclose(out, ref, atol=1e-5, rtol=1e-5), "mismatch vs reference"

    print("KERNEL_OK")
</pallas_src>

<mosaic_0001>
module attributes {stable_mosaic.version = 11 : i64} {
  func.func @lstm_encoder_kernel(%arg0: memref<8x2x16xf32, #tpu.memory_space<vmem>>, %arg1: memref<48x128xf32, #tpu.memory_space<vmem>>, %arg2: memref<1x128xf32, #tpu.memory_space<vmem>>, %arg3: memref<8x32xf32, #tpu.memory_space<vmem>>) attributes {dimension_semantics = [], scalar_prefetch = 0 : i64, scratch_operands = 0 : i64, tpu.core_type = #tpu.core_type<tc>} {
    %c0 = arith.constant 0 : index
    %c0_0 = arith.constant 0 : index
    %0 = vector.load %arg1[%c0, %c0_0] : memref<48x128xf32, #tpu.memory_space<vmem>>, vector<48x128xf32>
    %c0_1 = arith.constant 0 : index
    %c0_2 = arith.constant 0 : index
    %1 = vector.load %arg2[%c0_1, %c0_2] : memref<1x128xf32, #tpu.memory_space<vmem>>, vector<1x128xf32>
    %cst = arith.constant 0.000000e+00 : f32
    %2 = vector.broadcast %cst : f32 to vector<2x32xf32>
    %cst_3 = arith.constant 0.000000e+00 : f32
    %3 = vector.broadcast %cst_3 : f32 to vector<2x32xf32>
    %c0_i32 = arith.constant 0 : i32
    %4 = arith.index_cast %c0_i32 : i32 to index
    %c0_4 = arith.constant 0 : index
    %c0_5 = arith.constant 0 : index
    %5 = vector.load %arg0[%4, %c0_4, %c0_5] : memref<8x2x16xf32, #tpu.memory_space<vmem>>, vector<1x2x16xf32>
    %6 = vector.shape_cast %5 : vector<1x2x16xf32> to vector<2x16xf32>
    %7 = tpu.concatenate %6, %2 in 1 : vector<2x16xf32>, vector<2x32xf32> -> vector<2x48xf32>
    %cst_6 = arith.constant dense<0.000000e+00> : vector<2x128xf32>
    %8 = tpu.matmul %7, %0, %cst_6 {dimension_numbers = #tpu.dot_dimension_numbers<[1], [0], [0], [1], [0, 0, 1, 1], [], []>} : vector<2x48xf32>, vector<48x128xf32>, vector<2x128xf32> -> vector<2x128xf32>
    %9 = vector.broadcast %1 : vector<1x128xf32> to vector<2x128xf32>
    %10 = arith.addf %8, %9 : vector<2x128xf32>
    %11 = vector.extract_strided_slice %10 {offsets = [0, 0], sizes = [2, 32], strides = [1, 1]} : vector<2x128xf32> to vector<2x32xf32>
    %12 = arith.negf %11 : vector<2x32xf32>
    %13 = math.exp %12 : vector<2x32xf32>
    %cst_7 = arith.constant 1.000000e+00 : f32
    %14 = vector.broadcast %cst_7 : f32 to vector<2x32xf32>
    %15 = arith.addf %14, %13 : vector<2x32xf32>
    %16 = arith.divf %14, %15 : vector<2x32xf32>
    %17 = vector.extract_strided_slice %10 {offsets = [0, 32], sizes = [2, 32], strides = [1, 1]} : vector<2x128xf32> to vector<2x32xf32>
    %18 = arith.negf %17 : vector<2x32xf32>
    %19 = math.exp %18 : vector<2x32xf32>
    %cst_8 = arith.constant 1.000000e+00 : f32
    %20 = vector.broadcast %cst_8 : f32 to vector<2x32xf32>
    %21 = arith.addf %20, %19 : vector<2x32xf32>
    %22 = arith.divf %20, %21 : vector<2x32xf32>
    %23 = vector.extract_strided_slice %10 {offsets = [0, 64], sizes = [2, 32], strides = [1, 1]} : vector<2x128xf32> to vector<2x32xf32>
    %24 = math.tanh %23 : vector<2x32xf32>
    %25 = vector.extract_strided_slice %10 {offsets = [0, 96], sizes = [2, 32], strides = [1, 1]} : vector<2x128xf32> to vector<2x32xf32>
    %26 = arith.negf %25 : vector<2x32xf32>
    %27 = math.exp %26 : vector<2x32xf32>
    %cst_9 = arith.constant 1.000000e+00 : f32
    %28 = vector.broadcast %cst_9 : f32 to vector<2x32xf32>
    %29 = arith.addf %28, %27 : vector<2x32xf32>
    %30 = arith.divf %28, %29 : vector<2x32xf32>
    %31 = arith.mulf %22, %3 : vector<2x32xf32>
    %32 = arith.mulf %16, %24 : vector<2x32xf32>
    %33 = arith.addf %31, %32 : vector<2x32xf32>
    %34 = math.tanh %33 : vector<2x32xf32>
    %35 = arith.mulf %30, %34 : vector<2x32xf32>
    %cst_10 = arith.constant dense<0.000000e+00> : vector<32xf32>
    %36 = vector.multi_reduction <add>, %35, %cst_10 [0] : vector<2x32xf32> to vector<32xf32>
    %37 = vector.shape_cast %36 : vector<32xf32> to vector<1x32xf32>
    %cst_11 = arith.constant 2.000000e+00 : f32
    %38 = vector.broadcast %cst_11 : f32 to vector<1x32xf32>
    %39 = arith.divf %37, %38 : vector<1x32xf32>
    %40 = arith.index_cast %c0_i32 : i32 to index
    %c0_12 = arith.constant 0 : index
    %41 = vector.load %arg3[%40, %c0_12] : memref<8x32xf32, #tpu.memory_space<vmem>>, vector<1x32xf32>
    tpu.vector_store %arg3[%40, %c0_12], %39 {strides = array<i32>} : memref<8x32xf32, #tpu.memory_space<vmem>>, vector<1x32xf32>,
    %c1_i32 = arith.constant 1 : i32
    %42 = arith.index_cast %c1_i32 : i32 to index
    %c0_13 = arith.constant 0 : index
    %c0_14 = arith.constant 0 : index
    %43 = vector.load %arg0[%42, %c0_13, %c0_14] : memref<8x2x16xf32, #tpu.memory_space<vmem>>, vector<1x2x16xf32>
    %44 = vector.shape_cast %43 : vector<1x2x16xf32> to vector<2x16xf32>
    %45 = tpu.concatenate %44, %35 in 1 : vector<2x16xf32>, vector<2x32xf32> -> vector<2x48xf32>
    %cst_15 = arith.constant dense<0.000000e+00> : vector<2x128xf32>
    %46 = tpu.matmul %45, %0, %cst_15 {dimension_numbers = #tpu.dot_dimension_numbers<[1], [0], [0], [1], [0, 0, 1, 1], [], []>} : vector<2x48xf32>, vector<48x128xf32>, vector<2x128xf32> -> vector<2x128xf32>
    %47 = vector.broadcast %1 : vector<1x128xf32> to vector<2x128xf32>
    %48 = arith.addf %46, %47 : vector<2x128xf32>
    %49 = vector.extract_strided_slice %48 {offsets = [0, 0], sizes = [2, 32], strides = [1, 1]} : vector<2x128xf32> to vector<2x32xf32>
    %50 = arith.negf %49 : vector<2x32xf32>
    %51 = math.exp %50 : vector<2x32xf32>
    %cst_16 = arith.constant 1.000000e+00 : f32
    %52 = vector.broadcast %cst_16 : f32 to vector<2x32xf32>
    %53 = arith.addf %52, %51 : vector<2x32xf32>
    %54 = arith.divf %52, %53 : vector<2x32xf32>
    %55 = vector.extract_strided_slice %48 {offsets = [0, 32], sizes = [2, 32], strides = [1, 1]} : vector<2x128xf32> to vector<2x32xf32>
    %56 = arith.negf %55 : vector<2x32xf32>
    %57 = math.exp %56 : vector<2x32xf32>
    %cst_17 = arith.constant 1.000000e+00 : f32
    %58 = vector.broadcast %cst_17 : f32 to vector<2x32xf32>
    %59 = arith.addf %58, %57 : vector<2x32xf32>
    %60 = arith.divf %58, %59 : vector<2x32xf32>
    %61 = vector.extract_strided_slice %48 {offsets = [0, 64], sizes = [2, 32], strides = [1, 1]} : vector<2x128xf32> to vector<2x32xf32>
    %62 = math.tanh %61 : vector<2x32xf32>
    %63 = vector.extract_strided_slice %48 {offsets = [0, 96], sizes = [2, 32], strides = [1, 1]} : vector<2x128xf32> to vector<2x32xf32>
    %64 = arith.negf %63 : vector<2x32xf32>
    %65 = math.exp %64 : vector<2x32xf32>
    %cst_18 = arith.constant 1.000000e+00 : f32
    %66 = vector.broadcast %cst_18 : f32 to vector<2x32xf32>
    %67 = arith.addf %66, %65 : vector<2x32xf32>
    %68 = arith.divf %66, %67 : vector<2x32xf32>
    %69 = arith.mulf %60, %33 : vector<2x32xf32>
    %70 = arith.mulf %54, %62 : vector<2x32xf32>
    %71 = arith.addf %69, %70 : vector<2x32xf32>
    %72 = math.tanh %71 : vector<2x32xf32>
    %73 = arith.mulf %68, %72 : vector<2x32xf32>
    %cst_19 = arith.constant dense<0.000000e+00> : vector<32xf32>
    %74 = vector.multi_reduction <add>, %73, %cst_19 [0] : vector<2x32xf32> to vector<32xf32>
    %75 = vector.shape_cast %74 : vector<32xf32> to vector<1x32xf32>
    %cst_20 = arith.constant 2.000000e+00 : f32
    %76 = vector.broadcast %cst_20 : f32 to vector<1x32xf32>
    %77 = arith.divf %75, %76 : vector<1x32xf32>
    %78 = arith.index_cast %c1_i32 : i32 to index
    %c0_21 = arith.constant 0 : index
    %79 = vector.load %arg3[%78, %c0_21] : memref<8x32xf32, #tpu.memory_space<vmem>>, vector<1x32xf32>
    tpu.vector_store %arg3[%78, %c0_21], %77 {strides = array<i32>} : memref<8x32xf32, #tpu.memory_space<vmem>>, vector<1x32xf32>,
    %c2_i32 = arith.constant 2 : i32
    %80 = arith.index_cast %c2_i32 : i32 to index
    %c0_22 = arith.constant 0 : index
    %c0_23 = arith.constant 0 : index
    %81 = vector.load %arg0[%80, %c0_22, %c0_23] : memref<8x2x16xf32, #tpu.memory_space<vmem>>, vector<1x2x16xf32>
    %82 = vector.shape_cast %81 : vector<1x2x16xf32> to vector<2x16xf32>
    %83 = tpu.concatenate %82, %73 in 1 : vector<2x16xf32>, vector<2x32xf32> -> vector<2x48xf32>
    %cst_24 = arith.constant dense<0.000000e+00> : vector<2x128xf32>
    %84 = tpu.matmul %83, %0, %cst_24 {dimension_numbers = #tpu.dot_dimension_numbers<[1], [0], [0], [1], [0, 0, 1, 1], [], []>} : vector<2x48xf32>, vector<48x128xf32>, vector<2x128xf32> -> vector<2x128xf32>
    %85 = vector.broadcast %1 : vector<1x128xf32> to vector<2x128xf32>
    %86 = arith.addf %84, %85 : vector<2x128xf32>
    %87 = vector.extract_strided_slice %86 {offsets = [0, 0], sizes = [2, 32], strides = [1, 1]} : vector<2x128xf32> to vector<2x32xf32>
    %88 = arith.negf %87 : vector<2x32xf32>
    %89 = math.exp %88 : vector<2x32xf32>
    %cst_25 = arith.constant 1.000000e+00 : f32
    %90 = vector.broadcast %cst_25 : f32 to vector<2x32xf32>
    %91 = arith.addf %90, %89 : vector<2x32xf32>
    %92 = arith.divf %90, %91 : vector<2x32xf32>
    %93 = vector.extract_strided_slice %86 {offsets = [0, 32], sizes = [2, 32], strides = [1, 1]} : vector<2x128xf32> to vector<2x32xf32>
    %94 = arith.negf %93 : vector<2x32xf32>
    %95 = math.exp %94 : vector<2x32xf32>
    %cst_26 = arith.constant 1.000000e+00 : f32
    %96 = vector.broadcast %cst_26 : f32 to vector<2x32xf32>
    %97 = arith.addf %96, %95 : vector<2x32xf32>
    %98 = arith.divf %96, %97 : vector<2x32xf32>
    %99 = vector.extract_strided_slice %86 {offsets = [0, 64], sizes = [2, 32], strides = [1, 1]} : vector<2x128xf32> to vector<2x32xf32>
    %100 = math.tanh %99 : vector<2x32xf32>
    %101 = vector.extract_strided_slice %86 {offsets = [0, 96], sizes = [2, 32], strides = [1, 1]} : vector<2x128xf32> to vector<2x32xf32>
    %102 = arith.negf %101 : vector<2x32xf32>
    %103 = math.exp %102 : vector<2x32xf32>
    %cst_27 = arith.constant 1.000000e+00 : f32
    %104 = vector.broadcast %cst_27 : f32 to vector<2x32xf32>
    %105 = arith.addf %104, %103 : vector<2x32xf32>
    %106 = arith.divf %104, %105 : vector<2x32xf32>
    %107 = arith.mulf %98, %71 : vector<2x32xf32>
    %108 = arith.mulf %92, %100 : vector<2x32xf32>
    %109 = arith.addf %107, %108 : vector<2x32xf32>
    %110 = math.tanh %109 : vector<2x32xf32>
    %111 = arith.mulf %106, %110 : vector<2x32xf32>
    %cst_28 = arith.constant dense<0.000000e+00> : vector<32xf32>
    %112 = vector.multi_reduction <add>, %111, %cst_28 [0] : vector<2x32xf32> to vector<32xf32>
    %113 = vector.shape_cast %112 : vector<32xf32> to vector<1x32xf32>
    %cst_29 = arith.constant 2.000000e+00 : f32
    %114 = vector.broadcast %cst_29 : f32 to vector<1x32xf32>
    %115 = arith.divf %113, %114 : vector<1x32xf32>
    %116 = arith.index_cast %c2_i32 : i32 to index
    %c0_30 = arith.constant 0 : index
    %117 = vector.load %arg3[%116, %c0_30] : memref<8x32xf32, #tpu.memory_space<vmem>>, vector<1x32xf32>
    tpu.vector_store %arg3[%116, %c0_30], %115 {strides = array<i32>} : memref<8x32xf32, #tpu.memory_space<vmem>>, vector<1x32xf32>,
    %c3_i32 = arith.constant 3 : i32
    %118 = arith.index_cast %c3_i32 : i32 to index
    %c0_31 = arith.constant 0 : index
    %c0_32 = arith.constant 0 : index
    %119 = vector.load %arg0[%118, %c0_31, %c0_32] : memref<8x2x16xf32, #tpu.memory_space<vmem>>, vector<1x2x16xf32>
    %120 = vector.shape_cast %119 : vector<1x2x16xf32> to vector<2x16xf32>
    %121 = tpu.concatenate %120, %111 in 1 : vector<2x16xf32>, vector<2x32xf32> -> vector<2x48xf32>
    %cst_33 = arith.constant dense<0.000000e+00> : vector<2x128xf32>
    %122 = tpu.matmul %121, %0, %cst_33 {dimension_numbers = #tpu.dot_dimension_numbers<[1], [0], [0], [1], [0, 0, 1, 1], [], []>} : vector<2x48xf32>, vector<48x128xf32>, vector<2x128xf32> -> vector<2x128xf32>
    %123 = vector.broadcast %1 : vector<1x128xf32> to vector<2x128xf32>
    %124 = arith.addf %122, %123 : vector<2x128xf32>
    %125 = vector.extract_strided_slice %124 {offsets = [0, 0], sizes = [2, 32], strides = [1, 1]} : vector<2x128xf32> to vector<2x32xf32>
    %126 = arith.negf %125 : vector<2x32xf32>
    %127 = math.exp %126 : vector<2x32xf32>
    %cst_34 = arith.constant 1.000000e+00 : f32
    %128 = vector.broadcast %cst_34 : f32 to vector<2x32xf32>
    %129 = arith.addf %128, %127 : vector<2x32xf32>
    %130 = arith.divf %128, %129 : vector<2x32xf32>
    %131 = vector.extract_strided_slice %124 {offsets = [0, 32], sizes = [2, 32], strides = [1, 1]} : vector<2x128xf32> to vector<2x32xf32>
    %132 = arith.negf %131 : vector<2x32xf32>
    %133 = math.exp %132 : vector<2x32xf32>
    %cst_35 = arith.constant 1.000000e+00 : f32
    %134 = vector.broadcast %cst_35 : f32 to vector<2x32xf32>
    %135 = arith.addf %134, %133 : vector<2x32xf32>
    %136 = arith.divf %134, %135 : vector<2x32xf32>
    %137 = vector.extract_strided_slice %124 {offsets = [0, 64], sizes = [2, 32], strides = [1, 1]} : vector<2x128xf32> to vector<2x32xf32>
    %138 = math.tanh %137 : vector<2x32xf32>
    %139 = vector.extract_strided_slice %124 {offsets = [0, 96], sizes = [2, 32], strides = [1, 1]} : vector<2x128xf32> to vector<2x32xf32>
    %140 = arith.negf %139 : vector<2x32xf32>
    %141 = math.exp %140 : vector<2x32xf32>
    %cst_36 = arith.constant 1.000000e+00 : f32
    %142 = vector.broadcast %cst_36 : f32 to vector<2x32xf32>
    %143 = arith.addf %142, %141 : vector<2x32xf32>
    %144 = arith.divf %142, %143 : vector<2x32xf32>
    %145 = arith.mulf %136, %109 : vector<2x32xf32>
    %146 = arith.mulf %130, %138 : vector<2x32xf32>
    %147 = arith.addf %145, %146 : vector<2x32xf32>
    %148 = math.tanh %147 : vector<2x32xf32>
    %149 = arith.mulf %144, %148 : vector<2x32xf32>
    %cst_37 = arith.constant dense<0.000000e+00> : vector<32xf32>
    %150 = vector.multi_reduction <add>, %149, %cst_37 [0] : vector<2x32xf32> to vector<32xf32>
    %151 = vector.shape_cast %150 : vector<32xf32> to vector<1x32xf32>
    %cst_38 = arith.constant 2.000000e+00 : f32
    %152 = vector.broadcast %cst_38 : f32 to vector<1x32xf32>
    %153 = arith.divf %151, %152 : vector<1x32xf32>
    %154 = arith.index_cast %c3_i32 : i32 to index
    %c0_39 = arith.constant 0 : index
    %155 = vector.load %arg3[%154, %c0_39] : memref<8x32xf32, #tpu.memory_space<vmem>>, vector<1x32xf32>
    tpu.vector_store %arg3[%154, %c0_39], %153 {strides = array<i32>} : memref<8x32xf32, #tpu.memory_space<vmem>>, vector<1x32xf32>,
    %c4_i32 = arith.constant 4 : i32
    %156 = arith.index_cast %c4_i32 : i32 to index
    %c0_40 = arith.constant 0 : index
    %c0_41 = arith.constant 0 : index
    %157 = vector.load %arg0[%156, %c0_40, %c0_41] : memref<8x2x16xf32, #tpu.memory_space<vmem>>, vector<1x2x16xf32>
    %158 = vector.shape_cast %157 : vector<1x2x16xf32> to vector<2x16xf32>
    %159 = tpu.concatenate %158, %149 in 1 : vector<2x16xf32>, vector<2x32xf32> -> vector<2x48xf32>
    %cst_42 = arith.constant dense<0.000000e+00> : vector<2x128xf32>
    %160 = tpu.matmul %159, %0, %cst_42 {dimension_numbers = #tpu.dot_dimension_numbers<[1], [0], [0], [1], [0, 0, 1, 1], [], []>} : vector<2x48xf32>, vector<48x128xf32>, vector<2x128xf32> -> vector<2x128xf32>
    %161 = vector.broadcast %1 : vector<1x128xf32> to vector<2x128xf32>
    %162 = arith.addf %160, %161 : vector<2x128xf32>
    %163 = vector.extract_strided_slice %162 {offsets = [0, 0], sizes = [2, 32], strides = [1, 1]} : vector<2x128xf32> to vector<2x32xf32>
    %164 = arith.negf %163 : vector<2x32xf32>
    %165 = math.exp %164 : vector<2x32xf32>
    %cst_43 = arith.constant 1.000000e+00 : f32
    %166 = vector.broadcast %cst_43 : f32 to vector<2x32xf32>
    %167 = arith.addf %166, %165 : vector<2x32xf32>
    %168 = arith.divf %166, %167 : vector<2x32xf32>
    %169 = vector.extract_strided_slice %162 {offsets = [0, 32], sizes = [2, 32], strides = [1, 1]} : vector<2x128xf32> to vector<2x32xf32>
    %170 = arith.negf %169 : vector<2x32xf32>
    %171 = math.exp %170 : vector<2x32xf32>
    %cst_44 = arith.constant 1.000000e+00 : f32
    %172 = vector.broadcast %cst_44 : f32 to vector<2x32xf32>
    %173 = arith.addf %172, %171 : vector<2x32xf32>
    %174 = arith.divf %172, %173 : vector<2x32xf32>
    %175 = vector.extract_strided_slice %162 {offsets = [0, 64], sizes = [2, 32], strides = [1, 1]} : vector<2x128xf32> to vector<2x32xf32>
    %176 = math.tanh %175 : vector<2x32xf32>
    %177 = vector.extract_strided_slice %162 {offsets = [0, 96], sizes = [2, 32], strides = [1, 1]} : vector<2x128xf32> to vector<2x32xf32>
    %178 = arith.negf %177 : vector<2x32xf32>
    %179 = math.exp %178 : vector<2x32xf32>
    %cst_45 = arith.constant 1.000000e+00 : f32
    %180 = vector.broadcast %cst_45 : f32 to vector<2x32xf32>
    %181 = arith.addf %180, %179 : vector<2x32xf32>
    %182 = arith.divf %180, %181 : vector<2x32xf32>
    %183 = arith.mulf %174, %147 : vector<2x32xf32>
    %184 = arith.mulf %168, %176 : vector<2x32xf32>
    %185 = arith.addf %183, %184 : vector<2x32xf32>
    %186 = math.tanh %185 : vector<2x32xf32>
    %187 = arith.mulf %182, %186 : vector<2x32xf32>
    %cst_46 = arith.constant dense<0.000000e+00> : vector<32xf32>
    %188 = vector.multi_reduction <add>, %187, %cst_46 [0] : vector<2x32xf32> to vector<32xf32>
    %189 = vector.shape_cast %188 : vector<32xf32> to vector<1x32xf32>
    %cst_47 = arith.constant 2.000000e+00 : f32
    %190 = vector.broadcast %cst_47 : f32 to vector<1x32xf32>
    %191 = arith.divf %189, %190 : vector<1x32xf32>
    %192 = arith.index_cast %c4_i32 : i32 to index
    %c0_48 = arith.constant 0 : index
    %193 = vector.load %arg3[%192, %c0_48] : memref<8x32xf32, #tpu.memory_space<vmem>>, vector<1x32xf32>
    tpu.vector_store %arg3[%192, %c0_48], %191 {strides = array<i32>} : memref<8x32xf32, #tpu.memory_space<vmem>>, vector<1x32xf32>,
    %c5_i32 = arith.constant 5 : i32
    %194 = arith.index_cast %c5_i32 : i32 to index
    %c0_49 = arith.constant 0 : index
    %c0_50 = arith.constant 0 : index
    %195 = vector.load %arg0[%194, %c0_49, %c0_50] : memref<8x2x16xf32, #tpu.memory_space<vmem>>, vector<1x2x16xf32>
    %196 = vector.shape_cast %195 : vector<1x2x16xf32> to vector<2x16xf32>
    %197 = tpu.concatenate %196, %187 in 1 : vector<2x16xf32>, vector<2x32xf32> -> vector<2x48xf32>
    %cst_51 = arith.constant dense<0.000000e+00> : vector<2x128xf32>
    %198 = tpu.matmul %197, %0, %cst_51 {dimension_numbers = #tpu.dot_dimension_numbers<[1], [0], [0], [1], [0, 0, 1, 1], [], []>} : vector<2x48xf32>, vector<48x128xf32>, vector<2x128xf32> -> vector<2x128xf32>
    %199 = vector.broadcast %1 : vector<1x128xf32> to vector<2x128xf32>
    %200 = arith.addf %198, %199 : vector<2x128xf32>
    %201 = vector.extract_strided_slice %200 {offsets = [0, 0], sizes = [2, 32], strides = [1, 1]} : vector<2x128xf32> to vector<2x32xf32>
    %202 = arith.negf %201 : vector<2x32xf32>
    %203 = math.exp %202 : vector<2x32xf32>
    %cst_52 = arith.constant 1.000000e+00 : f32
    %204 = vector.broadcast %cst_52 : f32 to vector<2x32xf32>
    %205 = arith.addf %204, %203 : vector<2x32xf32>
    %206 = arith.divf %204, %205 : vector<2x32xf32>
    %207 = vector.extract_strided_slice %200 {offsets = [0, 32], sizes = [2, 32], strides = [1, 1]} : vector<2x128xf32> to vector<2x32xf32>
    %208 = arith.negf %207 : vector<2x32xf32>
    %209 = math.exp %208 : vector<2x32xf32>
    %cst_53 = arith.constant 1.000000e+00 : f32
    %210 = vector.broadcast %cst_53 : f32 to vector<2x32xf32>
    %211 = arith.addf %210, %209 : vector<2x32xf32>
    %212 = arith.divf %210, %211 : vector<2x32xf32>
    %213 = vector.extract_strided_slice %200 {offsets = [0, 64], sizes = [2, 32], strides = [1, 1]} : vector<2x128xf32> to vector<2x32xf32>
    %214 = math.tanh %213 : vector<2x32xf32>
    %215 = vector.extract_strided_slice %200 {offsets = [0, 96], sizes = [2, 32], strides = [1, 1]} : vector<2x128xf32> to vector<2x32xf32>
    %216 = arith.negf %215 : vector<2x32xf32>
    %217 = math.exp %216 : vector<2x32xf32>
    %cst_54 = arith.constant 1.000000e+00 : f32
    %218 = vector.broadcast %cst_54 : f32 to vector<2x32xf32>
    %219 = arith.addf %218, %217 : vector<2x32xf32>
    %220 = arith.divf %218, %219 : vector<2x32xf32>
    %221 = arith.mulf %212, %185 : vector<2x32xf32>
    %222 = arith.mulf %206, %214 : vector<2x32xf32>
    %223 = arith.addf %221, %222 : vector<2x32xf32>
    %224 = math.tanh %223 : vector<2x32xf32>
    %225 = arith.mulf %220, %224 : vector<2x32xf32>
    %cst_55 = arith.constant dense<0.000000e+00> : vector<32xf32>
    %226 = vector.multi_reduction <add>, %225, %cst_55 [0] : vector<2x32xf32> to vector<32xf32>
    %227 = vector.shape_cast %226 : vector<32xf32> to vector<1x32xf32>
    %cst_56 = arith.constant 2.000000e+00 : f32
    %228 = vector.broadcast %cst_56 : f32 to vector<1x32xf32>
    %229 = arith.divf %227, %228 : vector<1x32xf32>
    %230 = arith.index_cast %c5_i32 : i32 to index
    %c0_57 = arith.constant 0 : index
    %231 = vector.load %arg3[%230, %c0_57] : memref<8x32xf32, #tpu.memory_space<vmem>>, vector<1x32xf32>
    tpu.vector_store %arg3[%230, %c0_57], %229 {strides = array<i32>} : memref<8x32xf32, #tpu.memory_space<vmem>>, vector<1x32xf32>,
    %c6_i32 = arith.constant 6 : i32
    %232 = arith.index_cast %c6_i32 : i32 to index
    %c0_58 = arith.constant 0 : index
    %c0_59 = arith.constant 0 : index
    %233 = vector.load %arg0[%232, %c0_58, %c0_59] : memref<8x2x16xf32, #tpu.memory_space<vmem>>, vector<1x2x16xf32>
    %234 = vector.shape_cast %233 : vector<1x2x16xf32> to vector<2x16xf32>
    %235 = tpu.concatenate %234, %225 in 1 : vector<2x16xf32>, vector<2x32xf32> -> vector<2x48xf32>
    %cst_60 = arith.constant dense<0.000000e+00> : vector<2x128xf32>
    %236 = tpu.matmul %235, %0, %cst_60 {dimension_numbers = #tpu.dot_dimension_numbers<[1], [0], [0], [1], [0, 0, 1, 1], [], []>} : vector<2x48xf32>, vector<48x128xf32>, vector<2x128xf32> -> vector<2x128xf32>
    %237 = vector.broadcast %1 : vector<1x128xf32> to vector<2x128xf32>
    %238 = arith.addf %236, %237 : vector<2x128xf32>
    %239 = vector.extract_strided_slice %238 {offsets = [0, 0], sizes = [2, 32], strides = [1, 1]} : vector<2x128xf32> to vector<2x32xf32>
    %240 = arith.negf %239 : vector<2x32xf32>
    %241 = math.exp %240 : vector<2x32xf32>
    %cst_61 = arith.constant 1.000000e+00 : f32
    %242 = vector.broadcast %cst_61 : f32 to vector<2x32xf32>
    %243 = arith.addf %242, %241 : vector<2x32xf32>
    %244 = arith.divf %242, %243 : vector<2x32xf32>
    %245 = vector.extract_strided_slice %238 {offsets = [0, 32], sizes = [2, 32], strides = [1, 1]} : vector<2x128xf32> to vector<2x32xf32>
    %246 = arith.negf %245 : vector<2x32xf32>
    %247 = math.exp %246 : vector<2x32xf32>
    %cst_62 = arith.constant 1.000000e+00 : f32
    %248 = vector.broadcast %cst_62 : f32 to vector<2x32xf32>
    %249 = arith.addf %248, %247 : vector<2x32xf32>
    %250 = arith.divf %248, %249 : vector<2x32xf32>
    %251 = vector.extract_strided_slice %238 {offsets = [0, 64], sizes = [2, 32], strides = [1, 1]} : vector<2x128xf32> to vector<2x32xf32>
    %252 = math.tanh %251 : vector<2x32xf32>
    %253 = vector.extract_strided_slice %238 {offsets = [0, 96], sizes = [2, 32], strides = [1, 1]} : vector<2x128xf32> to vector<2x32xf32>
    %254 = arith.negf %253 : vector<2x32xf32>
    %255 = math.exp %254 : vector<2x32xf32>
    %cst_63 = arith.constant 1.000000e+00 : f32
    %256 = vector.broadcast %cst_63 : f32 to vector<2x32xf32>
    %257 = arith.addf %256, %255 : vector<2x32xf32>
    %258 = arith.divf %256, %257 : vector<2x32xf32>
    %259 = arith.mulf %250, %223 : vector<2x32xf32>
    %260 = arith.mulf %244, %252 : vector<2x32xf32>
    %261 = arith.addf %259, %260 : vector<2x32xf32>
    %262 = math.tanh %261 : vector<2x32xf32>
    %263 = arith.mulf %258, %262 : vector<2x32xf32>
    %cst_64 = arith.constant dense<0.000000e+00> : vector<32xf32>
    %264 = vector.multi_reduction <add>, %263, %cst_64 [0] : vector<2x32xf32> to vector<32xf32>
    %265 = vector.shape_cast %264 : vector<32xf32> to vector<1x32xf32>
    %cst_65 = arith.constant 2.000000e+00 : f32
    %266 = vector.broadcast %cst_65 : f32 to vector<1x32xf32>
    %267 = arith.divf %265, %266 : vector<1x32xf32>
    %268 = arith.index_cast %c6_i32 : i32 to index
    %c0_66 = arith.constant 0 : index
    %269 = vector.load %arg3[%268, %c0_66] : memref<8x32xf32, #tpu.memory_space<vmem>>, vector<1x32xf32>
    tpu.vector_store %arg3[%268, %c0_66], %267 {strides = array<i32>} : memref<8x32xf32, #tpu.memory_space<vmem>>, vector<1x32xf32>,
    %c7_i32 = arith.constant 7 : i32
    %270 = arith.index_cast %c7_i32 : i32 to index
    %c0_67 = arith.constant 0 : index
    %c0_68 = arith.constant 0 : index
    %271 = vector.load %arg0[%270, %c0_67, %c0_68] : memref<8x2x16xf32, #tpu.memory_space<vmem>>, vector<1x2x16xf32>
    %272 = vector.shape_cast %271 : vector<1x2x16xf32> to vector<2x16xf32>
    %273 = tpu.concatenate %272, %263 in 1 : vector<2x16xf32>, vector<2x32xf32> -> vector<2x48xf32>
    %cst_69 = arith.constant dense<0.000000e+00> : vector<2x128xf32>
    %274 = tpu.matmul %273, %0, %cst_69 {dimension_numbers = #tpu.dot_dimension_numbers<[1], [0], [0], [1], [0, 0, 1, 1], [], []>} : vector<2x48xf32>, vector<48x128xf32>, vector<2x128xf32> -> vector<2x128xf32>
    %275 = vector.broadcast %1 : vector<1x128xf32> to vector<2x128xf32>
    %276 = arith.addf %274, %275 : vector<2x128xf32>
    %277 = vector.extract_strided_slice %276 {offsets = [0, 0], sizes = [2, 32], strides = [1, 1]} : vector<2x128xf32> to vector<2x32xf32>
    %278 = arith.negf %277 : vector<2x32xf32>
    %279 = math.exp %278 : vector<2x32xf32>
    %cst_70 = arith.constant 1.000000e+00 : f32
    %280 = vector.broadcast %cst_70 : f32 to vector<2x32xf32>
    %281 = arith.addf %280, %279 : vector<2x32xf32>
    %282 = arith.divf %280, %281 : vector<2x32xf32>
    %283 = vector.extract_strided_slice %276 {offsets = [0, 32], sizes = [2, 32], strides = [1, 1]} : vector<2x128xf32> to vector<2x32xf32>
    %284 = arith.negf %283 : vector<2x32xf32>
    %285 = math.exp %284 : vector<2x32xf32>
    %cst_71 = arith.constant 1.000000e+00 : f32
    %286 = vector.broadcast %cst_71 : f32 to vector<2x32xf32>
    %287 = arith.addf %286, %285 : vector<2x32xf32>
    %288 = arith.divf %286, %287 : vector<2x32xf32>
    %289 = vector.extract_strided_slice %276 {offsets = [0, 64], sizes = [2, 32], strides = [1, 1]} : vector<2x128xf32> to vector<2x32xf32>
    %290 = math.tanh %289 : vector<2x32xf32>
    %291 = vector.extract_strided_slice %276 {offsets = [0, 96], sizes = [2, 32], strides = [1, 1]} : vector<2x128xf32> to vector<2x32xf32>
    %292 = arith.negf %291 : vector<2x32xf32>
    %293 = math.exp %292 : vector<2x32xf32>
    %cst_72 = arith.constant 1.000000e+00 : f32
    %294 = vector.broadcast %cst_72 : f32 to vector<2x32xf32>
    %295 = arith.addf %294, %293 : vector<2x32xf32>
    %296 = arith.divf %294, %295 : vector<2x32xf32>
    %297 = arith.mulf %288, %261 : vector<2x32xf32>
    %298 = arith.mulf %282, %290 : vector<2x32xf32>
    %299 = arith.addf %297, %298 : vector<2x32xf32>
    %300 = math.tanh %299 : vector<2x32xf32>
    %301 = arith.mulf %296, %300 : vector<2x32xf32>
    %cst_73 = arith.constant dense<0.000000e+00> : vector<32xf32>
    %302 = vector.multi_reduction <add>, %301, %cst_73 [0] : vector<2x32xf32> to vector<32xf32>
    %303 = vector.shape_cast %302 : vector<32xf32> to vector<1x32xf32>
    %cst_74 = arith.constant 2.000000e+00 : f32
    %304 = vector.broadcast %cst_74 : f32 to vector<1x32xf32>
    %305 = arith.divf %303, %304 : vector<1x32xf32>
    %306 = arith.index_cast %c7_i32 : i32 to index
    %c0_75 = arith.constant 0 : index
    %307 = vector.load %arg3[%306, %c0_75] : memref<8x32xf32, #tpu.memory_space<vmem>>, vector<1x32xf32>
    tpu.vector_store %arg3[%306, %c0_75], %305 {strides = array<i32>} : memref<8x32xf32, #tpu.memory_space<vmem>>, vector<1x32xf32>,
    %c8_i32 = arith.constant 8 : i32
    return
  }
}

</mosaic_0001>

<llo_original>
// kernel: tpu_custom_call.1
$region0: #{tpu_custom_call.1}
  #allocation0 [shape = 'u32[]', space=smem, size = 0x4, offset = 0x4, fixed_abs, tag = 'smem constant byte address 0x4 - core index']
  #allocation1 [shape = 'u32[144,128]{1,0:T(1,128)}', space=vmem, size = 0x12000, scoped, tag = 'internal scratch']
  %s0 = inlined_call_operand.hbm [shape: f32[8,2,16], index: 0, kind: input, shape index: {}]
  %s1 = inlined_call_operand.hbm [shape: f32[48,128], index: 1, kind: input, shape index: {}]
  %s2 = inlined_call_operand.vmem [shape: f32[1,128], index: 2, kind: input, shape index: {}]
  %s3 = inlined_call_operand.hbm [shape: f32[8,32], index: 3, kind: output, shape index: {}]
  %s4 = sld [smem:[#allocation0]]
  $region30: #{tpu_custom_call.1} parent=0
    _
  %s6 = ssub.s32 1, %s4
  %s7 = scalar_select 0, %s6, %s4
  $region1: #{tpu_custom_call.1} parent=0
    #allocation2 [shape = 'u8[8192]{0}', space=vmem, size = 0x2000, scoped, tag = 'input window, operand 0, single buffered']
    #allocation3 [shape = 's32[1]{0}', space=sflag, size = 0x4, scoped, tag = 'scoped memory for tpu_custom_call.1']
    #allocation4 [shape = 's32[1]{0}', space=sflag, size = 0x4, scoped, tag = 'scoped memory for tpu_custom_call.1']
    #allocation5 [shape = 'u8[24576]{0}', space=vmem, size = 0x6000, scoped, tag = 'input window, operand 1, single buffered']
    #allocation6 [shape = 's32[1]{0}', space=sflag, size = 0x4, scoped, tag = 'scoped memory for tpu_custom_call.1']
    #allocation7 [shape = 'u8[4096]{0}', space=vmem, size = 0x1000, scoped, tag = 'output window, operand 0, single buffered']
    %8 = vsyncpa [#allocation3], 0
    %9 = vsyncpa [#allocation6], 0
    %10 = vsyncpa [#allocation4], 0
    // Predicated region
    $region2: #{tpu_custom_call.1} parent=1 // pred_check
      _
    $region3: #{tpu_custom_call.1} parent=1 // pred_check_branch
      %12 = sbr.rel (0) target = $region5
    $region4: #{tpu_custom_call.1} parent=1 // pred_region
      %s14 = ssub.s32 256, 256
      %15 = vsyncadd [#allocation3], %s14
      %s16 = sshll.u32 [#allocation2], 4
      %s17 = int_to_ptr.vmem [resolvable:$true] %s16
      %22 = dma.hbm_to_vmem [thread:$0]  %s0, 256, %s17, [#allocation3], 32, 32, 2
    $region5: #{tpu_custom_call.1} parent=1 // pred_fallthru
      _
    // Predicated region
    $region6: #{tpu_custom_call.1} parent=1 // pred_check
      _
    $region7: #{tpu_custom_call.1} parent=1 // pred_check_branch
      %24 = sbr.rel (0) target = $region9
    $region8: #{tpu_custom_call.1} parent=1 // pred_region
      %s26 = ssub.s32 768, 768
      %27 = vsyncadd [#allocation6], %s26
      %s28 = sshll.u32 [#allocation5], 4
      %s29 = int_to_ptr.vmem [resolvable:$true] %s28
      %34 = dma.hbm_to_vmem [thread:$0]  %s1, 768, %s29, [#allocation6], 128, 128, 8
    $region9: #{tpu_custom_call.1} parent=1 // pred_fallthru
      _
    // Predicated region
    $region10: #{tpu_custom_call.1} parent=1 // pred_check
      _
    $region11: #{tpu_custom_call.1} parent=1 // pred_check_branch
      %36 = sbr.rel (0) target = $region13
    $region12: #{tpu_custom_call.1} parent=1 // pred_region
      _
    $region13: #{tpu_custom_call.1} parent=1 // pred_fallthru
      _
    // Predicated region
    $region14: #{tpu_custom_call.1} parent=1 // pred_check
      _
    $region15: #{tpu_custom_call.1} parent=1 // pred_check_branch
      %38 = sbr.rel (0) target = $region17
    $region16: #{tpu_custom_call.1} parent=1 // pred_region
      %39 = dma.done [#allocation3], 256
    $region17: #{tpu_custom_call.1} parent=1 // pred_fallthru
      _
    // Predicated region
    $region18: #{tpu_custom_call.1} parent=1 // pred_check
      _
    $region19: #{tpu_custom_call.1} parent=1 // pred_check_branch
      %41 = sbr.rel (0) target = $region21
    $region20: #{tpu_custom_call.1} parent=1 // pred_region
      %42 = dma.done [#allocation6], 768
    $region21: #{tpu_custom_call.1} parent=1 // pred_fallthru
      _
    %v43 = vld [vmem:[#allocation5] sm:$0xff]
    %v44 = vld [vmem:[#allocation5 + $0x8] sm:$0xff]
    %v45 = vld [vmem:[#allocation5 + $0x10] sm:$0xff]
    %v46 = vld [vmem:[#allocation5 + $0x18] sm:$0xff]
    %v47 = vld [vmem:[#allocation5 + $0x20] sm:$0xff]
    %v48 = vld [vmem:[#allocation5 + $0x28] sm:$0xff]
    %v49 = vld [vmem:[%s2] sm:$0x1]
    %v50 = vld [vmem:[#allocation2] sm:$0x3]
    %vm51 = vcmask 130048
    %v52 = vsel %vm51, %v50, 0.0
    %v54 = vlaneseq
    %v55 = vshrl.u32 %v54, 7
    %v56 = vsub.s32 0, %v55
    %v57 = vrot.slane %v49, %v56
    %vm59 = vcmask 392192
    %v61 = vsel %vm59, %v52, 0
    %63 = vmatprep.subr.mxu0 0.0
    %64 = vmatpush1.msra.mxu0 %v43
    %65 = vmatprep.subr.mxu0 0.0
    %66 = vmatpush1.msra.mxu0 %v44
    %67 = vmatprep.subr.mxu0 0.0
    %68 = vmatpush1.msra.mxu0 %v45
    %69 = vmatprep.subr.mxu0 0.0
    %70 = vmatpush1.msra.mxu0 %v46
    %71 = vmatprep.subr.mxu0 0.0
    %72 = vmatpush1.msra.mxu0 %v47
    %73 = vmatprep.subr.mxu0 0.0
    %74 = vmatpush1.msra.mxu0 %v48
    %75 = vmatprep.subr.mxu0 0.0
    %76 = vmatpush1.msra.mxu0 0.0
    %77 = vmatprep.subr.mxu0 0.0
    %78 = vmatpush1.msra.mxu0 0.0
    %79 = vmatprep.subr.mxu0 0.0
    %80 = vmatpush1.msra.mxu0 0.0
    %81 = vmatprep.subr.mxu0 0.0
    %82 = vmatpush1.msra.mxu0 0.0
    %83 = vmatprep.subr.mxu0 0.0
    %84 = vmatpush1.msra.mxu0 0.0
    %85 = vmatprep.subr.mxu0 0.0
    %86 = vmatpush1.msra.mxu0 0.0
    %87 = vmatprep.subr.mxu0 0.0
    %88 = vmatpush1.msra.mxu0 0.0
    %89 = vmatprep.subr.mxu0 0.0
    %90 = vmatpush1.msra.mxu0 0.0
    %91 = vmatprep.subr.mxu0 0.0
    %92 = vmatpush1.msra.mxu0 0.0
    %93 = vmatprep.subr.mxu0 0.0
    %94 = vmatpush1.msra.mxu0 0.0
    %95 = vmatprep.subr.mxu0 0.0
    %96 = vmatpush1.msra.mxu0 0.0
    %97 = vmatprep.subr.mxu0 0.0
    %98 = vmatpush1.msra.mxu0 0.0
    %99 = vmatprep.subr.mxu0 0.0
    %100 = vmatpush1.msra.mxu0 0.0
    %101 = vmatprep.subr.mxu0 0.0
    %102 = vmatpush1.msra.mxu0 0.0
    %103 = vmatprep.subr.mxu0 0.0
    %104 = vmatpush1.msra.mxu0 0.0
    %105 = vmatprep.subr.mxu0 0.0
    %106 = vmatpush1.msra.mxu0 0.0
    %107 = vmatprep.subr.mxu0 0.0
    %108 = vmatpush1.msra.mxu0 0.0
    %109 = vmatprep.subr.mxu0 0.0
    %110 = vmatpush1.msra.mxu0 0.0
    %111 = vmatprep.subr.mxu0 0.0
    %112 = vmatpush1.msra.mxu0 0.0
    %113 = vmatprep.subr.mxu0 0.0
    %114 = vmatpush1.msra.mxu0 0.0
    %115 = vmatprep.subr.mxu0 0.0
    %116 = vmatpush1.msra.mxu0 0.0
    %117 = vmatprep.subr.mxu0 0.0
    %118 = vmatpush1.msra.mxu0 0.0
    %119 = vmatprep.subr.mxu0 0.0
    %120 = vmatpush1.msra.mxu0 0.0
    %121 = vmatprep.subr.mxu0 0.0
    %122 = vmatpush1.msra.mxu0 0.0
    %123 = vmatprep.subr.mxu0 0.0
    %124 = vmatpush1.msra.mxu0 0.0
    %125 = vmatprep.subr.mxu0 0.0
    %126 = vmatpush1.msra.mxu0 0.0
    %127 = vmatprep.mubr.f32.mxu0 0.0
    %128 = vmatmul.mubr.f32.gmra.mrb[0].mxu0 %v61
    %v129 = vpop.f32.mrb[0].mxu0
    %v130 = vadd.f32 %v57, %v129
    %v131 = vpop.f32.mrb[0].mxu0
    %132 = vdwg.mxu0
    %v133 = vxor.u32 %v130, 2147483648
    %v134 = vmul.f32 %v133, 1.442695
    %v135 = vpow.pop %v134
    %v136 = vadd.f32 %v135, 1.0
    %v137 = vrcp.pop %v136
    %v138 = vmul.f32 1.0, %v137
    %v139 = vtanh.pop %v130
    %v140 = vmul.f32 %v138, 0.0
    %142 = vrot.lane.b32.xlu0 %v139, 64
    %v143 = vpop.permute.xlu0 %142
    %v145 = vmul.f32 %v138, %v143
    %147 = vrot.lane.b32.xlu0 %v145, 32
    %v148 = vpop.permute.xlu0 %147
    %v150 = vadd.f32 %v140, %v148
    %v151 = vtanh.pop %v150
    %153 = vrot.lane.b32.xlu0 %v151, 64
    %v154 = vpop.permute.xlu0 %153
    %v156 = vmul.f32 %v138, %v154
    %vm157 = vcmask 1042176
    %v158 = vsel %vm157, %v156, 0.0
    %v159 = vrot.slane %v158, 4
    %v160 = vadd.f32 %v158, %v159
    %v161 = vrot.slane %v160, 2
    %v162 = vadd.f32 %v160, %v161
    %v163 = vrot.slane %v162, 1
    %v164 = vadd.f32 %v162, %v163
    %v165 = vrcp.pop 2.0
    %v166 = vmul.f32 %v164, %v165
    %168 = vrot.lane.b32.xlu0 %v166, 32
    %v169 = vpop.permute.xlu0 %168
    %vm171 = vcmask 253952
    %172 = vst.msk [vmem:[#allocation7] sm:$0x1] %vm171, %v169
    %s173 = scalar_lea.vmem [#allocation2], 2
    %v174 = vld [vmem:[%s173] sm:$0x3]
    %176 = vrot.lane.b32.xlu0 %v156, 48
    %v177 = vpop.permute.xlu0 %176
    %v179 = vsel %vm51, %v174, %v177
    %v181 = vsel %vm59, %v179, 0
    %183 = vmatprep.subr.mxu0 0.0
    %184 = vmatpush1.msra.mxu0 %v43
    %185 = vmatprep.subr.mxu0 0.0
    %186 = vmatpush1.msra.mxu0 %v44
    %187 = vmatprep.subr.mxu0 0.0
    %188 = vmatpush1.msra.mxu0 %v45
    %189 = vmatprep.subr.mxu0 0.0
    %190 = vmatpush1.msra.mxu0 %v46
    %191 = vmatprep.subr.mxu0 0.0
    %192 = vmatpush1.msra.mxu0 %v47
    %193 = vmatprep.subr.mxu0 0.0
    %194 = vmatpush1.msra.mxu0 %v48
    %195 = vmatprep.subr.mxu0 0.0
    %196 = vmatpush1.msra.mxu0 0.0
    %197 = vmatprep.subr.mxu0 0.0
    %198 = vmatpush1.msra.mxu0 0.0
    %199 = vmatprep.subr.mxu0 0.0
    %200 = vmatpush1.msra.mxu0 0.0
    %201 = vmatprep.subr.mxu0 0.0
    %202 = vmatpush1.msra.mxu0 0.0
    %203 = vmatprep.subr.mxu0 0.0
    %204 = vmatpush1.msra.mxu0 0.0
    %205 = vmatprep.subr.mxu0 0.0
    %206 = vmatpush1.msra.mxu0 0.0
    %207 = vmatprep.subr.mxu0 0.0
    %208 = vmatpush1.msra.mxu0 0.0
    %209 = vmatprep.subr.mxu0 0.0
    %210 = vmatpush1.msra.mxu0 0.0
    %211 = vmatprep.subr.mxu0 0.0
    %212 = vmatpush1.msra.mxu0 0.0
    %213 = vmatprep.subr.mxu0 0.0
    %214 = vmatpush1.msra.mxu0 0.0
    %215 = vmatprep.subr.mxu0 0.0
    %216 = vmatpush1.msra.mxu0 0.0
    %217 = vmatprep.subr.mxu0 0.0
    %218 = vmatpush1.msra.mxu0 0.0
    %219 = vmatprep.subr.mxu0 0.0
    %220 = vmatpush1.msra.mxu0 0.0
    %221 = vmatprep.subr.mxu0 0.0
    %222 = vmatpush1.msra.mxu0 0.0
    %223 = vmatprep.subr.mxu0 0.0
    %224 = vmatpush1.msra.mxu0 0.0
    %225 = vmatprep.subr.mxu0 0.0
    %226 = vmatpush1.msra.mxu0 0.0
    %227 = vmatprep.subr.mxu0 0.0
    %228 = vmatpush1.msra.mxu0 0.0
    %229 = vmatprep.subr.mxu0 0.0
    %230 = vmatpush1.msra.mxu0 0.0
    %231 = vmatprep.subr.mxu0 0.0
    %232 = vmatpush1.msra.mxu0 0.0
    %233 = vmatprep.subr.mxu0 0.0
    %234 = vmatpush1.msra.mxu0 0.0
    %235 = vmatprep.subr.mxu0 0.0
    %236 = vmatpush1.msra.mxu0 0.0
    %237 = vmatprep.subr.mxu0 0.0
    %238 = vmatpush1.msra.mxu0 0.0
    %239 = vmatprep.subr.mxu0 0.0
    %240 = vmatpush1.msra.mxu0 0.0
    %241 = vmatprep.subr.mxu0 0.0
    %242 = vmatpush1.msra.mxu0 0.0
    %243 = vmatprep.subr.mxu0 0.0
    %244 = vmatpush1.msra.mxu0 0.0
    %245 = vmatprep.subr.mxu0 0.0
    %246 = vmatpush1.msra.mxu0 0.0
    %247 = vmatprep.mubr.f32.mxu0 0.0
    %248 = vmatmul.mubr.f32.gmra.mrb[0].mxu0 %v181
    %v249 = vpop.f32.mrb[0].mxu0
    %v250 = vadd.f32 %v57, %v249
    %v251 = vpop.f32.mrb[0].mxu0
    %252 = vdwg.mxu0
    %v253 = vxor.u32 %v250, 2147483648
    %v254 = vmul.f32 %v253, 1.442695
    %v255 = vpow.pop %v254
    %v256 = vadd.f32 %v255, 1.0
    %v257 = vrcp.pop %v256
    %v258 = vmul.f32 1.0, %v257
    %v259 = vtanh.pop %v250
    %v260 = vmul.f32 %v258, %v150
    %262 = vrot.lane.b32.xlu0 %v259, 64
    %v263 = vpop.permute.xlu0 %262
    %v265 = vmul.f32 %v258, %v263
    %267 = vrot.lane.b32.xlu0 %v265, 32
    %v268 = vpop.permute.xlu0 %267
    %v270 = vadd.f32 %v260, %v268
    %v271 = vtanh.pop %v270
    %273 = vrot.lane.b32.xlu0 %v271, 64
    %v274 = vpop.permute.xlu0 %273
    %v276 = vmul.f32 %v258, %v274
    %v277 = vsel %vm157, %v276, 0.0
    %v278 = vrot.slane %v277, 4
    %v279 = vadd.f32 %v277, %v278
    %v280 = vrot.slane %v279, 2
    %v281 = vadd.f32 %v279, %v280
    %v282 = vrot.slane %v281, 1
    %v283 = vadd.f32 %v281, %v282
    %v284 = vmul.f32 %v283, %v165
    %286 = vrot.lane.b32.xlu0 %v284, 32
    %v287 = vpop.permute.xlu0 %286
    %289 = vst.msk [vmem:[#allocation7 + $0x1] sm:$0x1] %vm171, %v287
    %s290 = scalar_lea.vmem [#allocation2], 4
    %v291 = vld [vmem:[%s290] sm:$0x3]
    %293 = vrot.lane.b32.xlu0 %v276, 48
    %v294 = vpop.permute.xlu0 %293
    %v296 = vsel %vm51, %v291, %v294
    %v298 = vsel %vm59, %v296, 0
    %300 = vmatprep.subr.mxu0 0.0
    %301 = vmatpush1.msra.mxu0 %v43
    %302 = vmatprep.subr.mxu0 0.0
    %303 = vmatpush1.msra.mxu0 %v44
    %304 = vmatprep.subr.mxu0 0.0
    %305 = vmatpush1.msra.mxu0 %v45
    %306 = vmatprep.subr.mxu0 0.0
    %307 = vmatpush1.msra.mxu0 %v46
    %308 = vmatprep.subr.mxu0 0.0
    %309 = vmatpush1.msra.mxu0 %v47
    %310 = vmatprep.subr.mxu0 0.0
    %311 = vmatpush1.msra.mxu0 %v48
    %312 = vmatprep.subr.mxu0 0.0
    %313 = vmatpush1.msra.mxu0 0.0
    %314 = vmatprep.subr.mxu0 0.0
    %315 = vmatpush1.msra.mxu0 0.0
    %316 = vmatprep.subr.mxu0 0.0
    %317 = vmatpush1.msra.mxu0 0.0
    %318 = vmatprep.subr.mxu0 0.0
    %319 = vmatpush1.msra.mxu0 0.0
    %320 = vmatprep.subr.mxu0 0.0
    %321 = vmatpush1.msra.mxu0 0.0
    %322 = vmatprep.subr.mxu0 0.0
    %323 = vmatpush1.msra.mxu0 0.0
    %324 = vmatprep.subr.mxu0 0.0
    %325 = vmatpush1.msra.mxu0 0.0
    %326 = vmatprep.subr.mxu0 0.0
    %327 = vmatpush1.msra.mxu0 0.0
    %328 = vmatprep.subr.mxu0 0.0
    %329 = vmatpush1.msra.mxu0 0.0
    %330 = vmatprep.subr.mxu0 0.0
    %331 = vmatpush1.msra.mxu0 0.0
    %332 = vmatprep.subr.mxu0 0.0
    %333 = vmatpush1.msra.mxu0 0.0
    %334 = vmatprep.subr.mxu0 0.0
    %335 = vmatpush1.msra.mxu0 0.0
    %336 = vmatprep.subr.mxu0 0.0
    %337 = vmatpush1.msra.mxu0 0.0
    %338 = vmatprep.subr.mxu0 0.0
    %339 = vmatpush1.msra.mxu0 0.0
    %340 = vmatprep.subr.mxu0 0.0
    %341 = vmatpush1.msra.mxu0 0.0
    %342 = vmatprep.subr.mxu0 0.0
    %343 = vmatpush1.msra.mxu0 0.0
    %344 = vmatprep.subr.mxu0 0.0
    %345 = vmatpush1.msra.mxu0 0.0
    %346 = vmatprep.subr.mxu0 0.0
    %347 = vmatpush1.msra.mxu0 0.0
    %348 = vmatprep.subr.mxu0 0.0
    %349 = vmatpush1.msra.mxu0 0.0
    %350 = vmatprep.subr.mxu0 0.0
    %351 = vmatpush1.msra.mxu0 0.0
    %352 = vmatprep.subr.mxu0 0.0
    %353 = vmatpush1.msra.mxu0 0.0
    %354 = vmatprep.subr.mxu0 0.0
    %355 = vmatpush1.msra.mxu0 0.0
    %356 = vmatprep.subr.mxu0 0.0
    %357 = vmatpush1.msra.mxu0 0.0
    %358 = vmatprep.subr.mxu0 0.0
    %359 = vmatpush1.msra.mxu0 0.0
    %360 = vmatprep.subr.mxu0 0.0
    %361 = vmatpush1.msra.mxu0 0.0
    %362 = vmatprep.subr.mxu0 0.0
    %363 = vmatpush1.msra.mxu0 0.0
    %364 = vmatprep.mubr.f32.mxu0 0.0
    %365 = vmatmul.mubr.f32.gmra.mrb[0].mxu0 %v298
    %v366 = vpop.f32.mrb[0].mxu0
    %v367 = vadd.f32 %v57, %v366
    %v368 = vpop.f32.mrb[0].mxu0
    %369 = vdwg.mxu0
    %v370 = vxor.u32 %v367, 2147483648
    %v371 = vmul.f32 %v370, 1.442695
    %v372 = vpow.pop %v371
    %v373 = vadd.f32 %v372, 1.0
    %v374 = vrcp.pop %v373
    %v375 = vmul.f32 1.0, %v374
    %v376 = vtanh.pop %v367
    %v377 = vmul.f32 %v375, %v270
    %379 = vrot.lane.b32.xlu0 %v376, 64
    %v380 = vpop.permute.xlu0 %379
    %v382 = vmul.f32 %v375, %v380
    %384 = vrot.lane.b32.xlu0 %v382, 32
    %v385 = vpop.permute.xlu0 %384
    %v387 = vadd.f32 %v377, %v385
    %v388 = vtanh.pop %v387
    %390 = vrot.lane.b32.xlu0 %v388, 64
    %v391 = vpop.permute.xlu0 %390
    %v393 = vmul.f32 %v375, %v391
    %v394 = vsel %vm157, %v393, 0.0
    %v395 = vrot.slane %v394, 4
    %v396 = vadd.f32 %v394, %v395
    %v397 = vrot.slane %v396, 2
    %v398 = vadd.f32 %v396, %v397
    %v399 = vrot.slane %v398, 1
    %v400 = vadd.f32 %v398, %v399
    %v401 = vmul.f32 %v400, %v165
    %403 = vrot.lane.b32.xlu0 %v401, 32
    %v404 = vpop.permute.xlu0 %403
    %406 = vst.msk [vmem:[#allocation7 + $0x2] sm:$0x1] %vm171, %v404
    %s407 = scalar_lea.vmem [#allocation2], 6
    %v408 = vld [vmem:[%s407] sm:$0x3]
    %410 = vrot.lane.b32.xlu0 %v393, 48
    %v411 = vpop.permute.xlu0 %410
    %v413 = vsel %vm51, %v408, %v411
    %v415 = vsel %vm59, %v413, 0
    %417 = vmatprep.subr.mxu0 0.0
    %418 = vmatpush1.msra.mxu0 %v43
    %419 = vmatprep.subr.mxu0 0.0
    %420 = vmatpush1.msra.mxu0 %v44
    %421 = vmatprep.subr.mxu0 0.0
    %422 = vmatpush1.msra.mxu0 %v45
    %423 = vmatprep.subr.mxu0 0.0
    %424 = vmatpush1.msra.mxu0 %v46
    %425 = vmatprep.subr.mxu0 0.0
    %426 = vmatpush1.msra.mxu0 %v47
    %427 = vmatprep.subr.mxu0 0.0
    %428 = vmatpush1.msra.mxu0 %v48
    %429 = vmatprep.subr.mxu0 0.0
    %430 = vmatpush1.msra.mxu0 0.0
    %431 = vmatprep.subr.mxu0 0.0
    %432 = vmatpush1.msra.mxu0 0.0
    %433 = vmatprep.subr.mxu0 0.0
    %434 = vmatpush1.msra.mxu0 0.0
    %435 = vmatprep.subr.mxu0 0.0
    %436 = vmatpush1.msra.mxu0 0.0
    %437 = vmatprep.subr.mxu0 0.0
    %438 = vmatpush1.msra.mxu0 0.0
    %439 = vmatprep.subr.mxu0 0.0
    %440 = vmatpush1.msra.mxu0 0.0
    %441 = vmatprep.subr.mxu0 0.0
    %442 = vmatpush1.msra.mxu0 0.0
    %443 = vmatprep.subr.mxu0 0.0
    %444 = vmatpush1.msra.mxu0 0.0
    %445 = vmatprep.subr.mxu0 0.0
    %446 = vmatpush1.msra.mxu0 0.0
    %447 = vmatprep.subr.mxu0 0.0
    %448 = vmatpush1.msra.mxu0 0.0
    %449 = vmatprep.subr.mxu0 0.0
    %450 = vmatpush1.msra.mxu0 0.0
    %451 = vmatprep.subr.mxu0 0.0
    %452 = vmatpush1.msra.mxu0 0.0
    %453 = vmatprep.subr.mxu0 0.0
    %454 = vmatpush1.msra.mxu0 0.0
    %455 = vmatprep.subr.mxu0 0.0
    %456 = vmatpush1.msra.mxu0 0.0
    %457 = vmatprep.subr.mxu0 0.0
    %458 = vmatpush1.msra.mxu0 0.0
    %459 = vmatprep.subr.mxu0 0.0
    %460 = vmatpush1.msra.mxu0 0.0
    %461 = vmatprep.subr.mxu0 0.0
    %462 = vmatpush1.msra.mxu0 0.0
    %463 = vmatprep.subr.mxu0 0.0
    %464 = vmatpush1.msra.mxu0 0.0
    %465 = vmatprep.subr.mxu0 0.0
    %466 = vmatpush1.msra.mxu0 0.0
    %467 = vmatprep.subr.mxu0 0.0
    %468 = vmatpush1.msra.mxu0 0.0
    %469 = vmatprep.subr.mxu0 0.0
    %470 = vmatpush1.msra.mxu0 0.0
    %471 = vmatprep.subr.mxu0 0.0
    %472 = vmatpush1.msra.mxu0 0.0
    %473 = vmatprep.subr.mxu0 0.0
    %474 = vmatpush1.msra.mxu0 0.0
    %475 = vmatprep.subr.mxu0 0.0
    %476 = vmatpush1.msra.mxu0 0.0
    %477 = vmatprep.subr.mxu0 0.0
    %478 = vmatpush1.msra.mxu0 0.0
    %479 = vmatprep.subr.mxu0 0.0
    %480 = vmatpush1.msra.mxu0 0.0
    %481 = vmatprep.mubr.f32.mxu0 0.0
    %482 = vmatmul.mubr.f32.gmra.mrb[0].mxu0 %v415
    %v483 = vpop.f32.mrb[0].mxu0
    %v484 = vadd.f32 %v57, %v483
    %v485 = vpop.f32.mrb[0].mxu0
    %486 = vdwg.mxu0
    %v487 = vxor.u32 %v484, 2147483648
    %v488 = vmul.f32 %v487, 1.442695
    %v489 = vpow.pop %v488
    %v490 = vadd.f32 %v489, 1.0
    %v491 = vrcp.pop %v490
    %v492 = vmul.f32 1.0, %v491
    %v493 = vtanh.pop %v484
    %v494 = vmul.f32 %v492, %v387
    %496 = vrot.lane.b32.xlu0 %v493, 64
    %v497 = vpop.permute.xlu0 %496
    %v499 = vmul.f32 %v492, %v497
    %501 = vrot.lane.b32.xlu0 %v499, 32
    %v502 = vpop.permute.xlu0 %501
    %v504 = vadd.f32 %v494, %v502
    %v505 = vtanh.pop %v504
    %507 = vrot.lane.b32.xlu0 %v505, 64
    %v508 = vpop.permute.xlu0 %507
    %v510 = vmul.f32 %v492, %v508
    %v511 = vsel %vm157, %v510, 0.0
    %v512 = vrot.slane %v511, 4
    %v513 = vadd.f32 %v511, %v512
    %v514 = vrot.slane %v513, 2
    %v515 = vadd.f32 %v513, %v514
    %v516 = vrot.slane %v515, 1
    %v517 = vadd.f32 %v515, %v516
    %v518 = vmul.f32 %v517, %v165
    %520 = vrot.lane.b32.xlu0 %v518, 32
    %v521 = vpop.permute.xlu0 %520
    %523 = vst.msk [vmem:[#allocation7 + $0x3] sm:$0x1] %vm171, %v521
    %s524 = scalar_lea.vmem [#allocation2], 8
    %v525 = vld [vmem:[%s524] sm:$0x3]
    %527 = vrot.lane.b32.xlu0 %v510, 48
    %v528 = vpop.permute.xlu0 %527
    %v530 = vsel %vm51, %v525, %v528
    %v532 = vsel %vm59, %v530, 0
    %534 = vmatprep.subr.mxu0 0.0
    %535 = vmatpush1.msra.mxu0 %v43
    %536 = vmatprep.subr.mxu0 0.0
    %537 = vmatpush1.msra.mxu0 %v44
    %538 = vmatprep.subr.mxu0 0.0
    %539 = vmatpush1.msra.mxu0 %v45
    %540 = vmatprep.subr.mxu0 0.0
    %541 = vmatpush1.msra.mxu0 %v46
    %542 = vmatprep.subr.mxu0 0.0
    %543 = vmatpush1.msra.mxu0 %v47
    %544 = vmatprep.subr.mxu0 0.0
    %545 = vmatpush1.msra.mxu0 %v48
    %546 = vmatprep.subr.mxu0 0.0
    %547 = vmatpush1.msra.mxu0 0.0
    %548 = vmatprep.subr.mxu0 0.0
    %549 = vmatpush1.msra.mxu0 0.0
    %550 = vmatprep.subr.mxu0 0.0
    %551 = vmatpush1.msra.mxu0 0.0
    %552 = vmatprep.subr.mxu0 0.0
    %553 = vmatpush1.msra.mxu0 0.0
    %554 = vmatprep.subr.mxu0 0.0
    %555 = vmatpush1.msra.mxu0 0.0
    %556 = vmatprep.subr.mxu0 0.0
    %557 = vmatpush1.msra.mxu0 0.0
    %558 = vmatprep.subr.mxu0 0.0
    %559 = vmatpush1.msra.mxu0 0.0
    %560 = vmatprep.subr.mxu0 0.0
    %561 = vmatpush1.msra.mxu0 0.0
    %562 = vmatprep.subr.mxu0 0.0
    %563 = vmatpush1.msra.mxu0 0.0
    %564 = vmatprep.subr.mxu0 0.0
    %565 = vmatpush1.msra.mxu0 0.0
    %566 = vmatprep.subr.mxu0 0.0
    %567 = vmatpush1.msra.mxu0 0.0
    %568 = vmatprep.subr.mxu0 0.0
    %569 = vmatpush1.msra.mxu0 0.0
    %570 = vmatprep.subr.mxu0 0.0
    %571 = vmatpush1.msra.mxu0 0.0
    %572 = vmatprep.subr.mxu0 0.0
    %573 = vmatpush1.msra.mxu0 0.0
    %574 = vmatprep.subr.mxu0 0.0
    %575 = vmatpush1.msra.mxu0 0.0
    %576 = vmatprep.subr.mxu0 0.0
    %577 = vmatpush1.msra.mxu0 0.0
    %578 = vmatprep.subr.mxu0 0.0
    %579 = vmatpush1.msra.mxu0 0.0
    %580 = vmatprep.subr.mxu0 0.0
    %581 = vmatpush1.msra.mxu0 0.0
    %582 = vmatprep.subr.mxu0 0.0
    %583 = vmatpush1.msra.mxu0 0.0
    %584 = vmatprep.subr.mxu0 0.0
    %585 = vmatpush1.msra.mxu0 0.0
    %586 = vmatprep.subr.mxu0 0.0
    %587 = vmatpush1.msra.mxu0 0.0
    %588 = vmatprep.subr.mxu0 0.0
    %589 = vmatpush1.msra.mxu0 0.0
    %590 = vmatprep.subr.mxu0 0.0
    %591 = vmatpush1.msra.mxu0 0.0
    %592 = vmatprep.subr.mxu0 0.0
    %593 = vmatpush1.msra.mxu0 0.0
    %594 = vmatprep.subr.mxu0 0.0
    %595 = vmatpush1.msra.mxu0 0.0
    %596 = vmatprep.subr.mxu0 0.0
    %597 = vmatpush1.msra.mxu0 0.0
    %598 = vmatprep.mubr.f32.mxu0 0.0
    %599 = vmatmul.mubr.f32.gmra.mrb[0].mxu0 %v532
    %v600 = vpop.f32.mrb[0].mxu0
    %v601 = vadd.f32 %v57, %v600
    %v602 = vpop.f32.mrb[0].mxu0
    %603 = vdwg.mxu0
    %v604 = vxor.u32 %v601, 2147483648
    %v605 = vmul.f32 %v604, 1.442695
    %v606 = vpow.pop %v605
    %v607 = vadd.f32 %v606, 1.0
    %v608 = vrcp.pop %v607
    %v609 = vmul.f32 1.0, %v608
    %v610 = vtanh.pop %v601
    %v611 = vmul.f32 %v609, %v504
    %613 = vrot.lane.b32.xlu0 %v610, 64
    %v614 = vpop.permute.xlu0 %613
    %v616 = vmul.f32 %v609, %v614
    %618 = vrot.lane.b32.xlu0 %v616, 32
    %v619 = vpop.permute.xlu0 %618
    %v621 = vadd.f32 %v611, %v619
    %v622 = vtanh.pop %v621
    %624 = vrot.lane.b32.xlu0 %v622, 64
    %v625 = vpop.permute.xlu0 %624
    %v627 = vmul.f32 %v609, %v625
    %v628 = vsel %vm157, %v627, 0.0
    %v629 = vrot.slane %v628, 4
    %v630 = vadd.f32 %v628, %v629
    %v631 = vrot.slane %v630, 2
    %v632 = vadd.f32 %v630, %v631
    %v633 = vrot.slane %v632, 1
    %v634 = vadd.f32 %v632, %v633
    %v635 = vmul.f32 %v634, %v165
    %637 = vrot.lane.b32.xlu0 %v635, 32
    %v638 = vpop.permute.xlu0 %637
    %640 = vst.msk [vmem:[#allocation7 + $0x4] sm:$0x1] %vm171, %v638
    %s641 = scalar_lea.vmem [#allocation2], 10
    %v642 = vld [vmem:[%s641] sm:$0x3]
    %644 = vrot.lane.b32.xlu0 %v627, 48
    %v645 = vpop.permute.xlu0 %644
    %v647 = vsel %vm51, %v642, %v645
    %v649 = vsel %vm59, %v647, 0
    %651 = vmatprep.subr.mxu0 0.0
    %652 = vmatpush1.msra.mxu0 %v43
    %653 = vmatprep.subr.mxu0 0.0
    %654 = vmatpush1.msra.mxu0 %v44
    %655 = vmatprep.subr.mxu0 0.0
    %656 = vmatpush1.msra.mxu0 %v45
    %657 = vmatprep.subr.mxu0 0.0
    %658 = vmatpush1.msra.mxu0 %v46
    %659 = vmatprep.subr.mxu0 0.0
    %660 = vmatpush1.msra.mxu0 %v47
    %661 = vmatprep.subr.mxu0 0.0
    %662 = vmatpush1.msra.mxu0 %v48
    %663 = vmatprep.subr.mxu0 0.0
    %664 = vmatpush1.msra.mxu0 0.0
    %665 = vmatprep.subr.mxu0 0.0
    %666 = vmatpush1.msra.mxu0 0.0
    %667 = vmatprep.subr.mxu0 0.0
    %668 = vmatpush1.msra.mxu0 0.0
    %669 = vmatprep.subr.mxu0 0.0
    %670 = vmatpush1.msra.mxu0 0.0
    %671 = vmatprep.subr.mxu0 0.0
    %672 = vmatpush1.msra.mxu0 0.0
    %673 = vmatprep.subr.mxu0 0.0
    %674 = vmatpush1.msra.mxu0 0.0
    %675 = vmatprep.subr.mxu0 0.0
    %676 = vmatpush1.msra.mxu0 0.0
    %677 = vmatprep.subr.mxu0 0.0
    %678 = vmatpush1.msra.mxu0 0.0
    %679 = vmatprep.subr.mxu0 0.0
    %680 = vmatpush1.msra.mxu0 0.0
    %681 = vmatprep.subr.mxu0 0.0
    %682 = vmatpush1.msra.mxu0 0.0
    %683 = vmatprep.subr.mxu0 0.0
    %684 = vmatpush1.msra.mxu0 0.0
    %685 = vmatprep.subr.mxu0 0.0
    %686 = vmatpush1.msra.mxu0 0.0
    %687 = vmatprep.subr.mxu0 0.0
    %688 = vmatpush1.msra.mxu0 0.0
    %689 = vmatprep.subr.mxu0 0.0
    %690 = vmatpush1.msra.mxu0 0.0
    %691 = vmatprep.subr.mxu0 0.0
    %692 = vmatpush1.msra.mxu0 0.0
    %693 = vmatprep.subr.mxu0 0.0
    %694 = vmatpush1.msra.mxu0 0.0
    %695 = vmatprep.subr.mxu0 0.0
    %696 = vmatpush1.msra.mxu0 0.0
    %697 = vmatprep.subr.mxu0 0.0
    %698 = vmatpush1.msra.mxu0 0.0
    %699 = vmatprep.subr.mxu0 0.0
    %700 = vmatpush1.msra.mxu0 0.0
    %701 = vmatprep.subr.mxu0 0.0
    %702 = vmatpush1.msra.mxu0 0.0
    %703 = vmatprep.subr.mxu0 0.0
    %704 = vmatpush1.msra.mxu0 0.0
    %705 = vmatprep.subr.mxu0 0.0
    %706 = vmatpush1.msra.mxu0 0.0
    %707 = vmatprep.subr.mxu0 0.0
    %708 = vmatpush1.msra.mxu0 0.0
    %709 = vmatprep.subr.mxu0 0.0
    %710 = vmatpush1.msra.mxu0 0.0
    %711 = vmatprep.subr.mxu0 0.0
    %712 = vmatpush1.msra.mxu0 0.0
    %713 = vmatprep.subr.mxu0 0.0
    %714 = vmatpush1.msra.mxu0 0.0
    %715 = vmatprep.mubr.f32.mxu0 0.0
    %716 = vmatmul.mubr.f32.gmra.mrb[0].mxu0 %v649
    %v717 = vpop.f32.mrb[0].mxu0
    %v718 = vadd.f32 %v57, %v717
    %v719 = vpop.f32.mrb[0].mxu0
    %720 = vdwg.mxu0
    %v721 = vxor.u32 %v718, 2147483648
    %v722 = vmul.f32 %v721, 1.442695
    %v723 = vpow.pop %v722
    %v724 = vadd.f32 %v723, 1.0
    %v725 = vrcp.pop %v724
    %v726 = vmul.f32 1.0, %v725
    %v727 = vtanh.pop %v718
    %v728 = vmul.f32 %v726, %v621
    %730 = vrot.lane.b32.xlu0 %v727, 64
    %v731 = vpop.permute.xlu0 %730
    %v733 = vmul.f32 %v726, %v731
    %735 = vrot.lane.b32.xlu0 %v733, 32
    %v736 = vpop.permute.xlu0 %735
    %v738 = vadd.f32 %v728, %v736
    %v739 = vtanh.pop %v738
    %741 = vrot.lane.b32.xlu0 %v739, 64
    %v742 = vpop.permute.xlu0 %741
    %v744 = vmul.f32 %v726, %v742
    %v745 = vsel %vm157, %v744, 0.0
    %v746 = vrot.slane %v745, 4
    %v747 = vadd.f32 %v745, %v746
    %v748 = vrot.slane %v747, 2
    %v749 = vadd.f32 %v747, %v748
    %v750 = vrot.slane %v749, 1
    %v751 = vadd.f32 %v749, %v750
    %v752 = vmul.f32 %v751, %v165
    %754 = vrot.lane.b32.xlu0 %v752, 32
    %v755 = vpop.permute.xlu0 %754
    %757 = vst.msk [vmem:[#allocation7 + $0x5] sm:$0x1] %vm171, %v755
    %s758 = scalar_lea.vmem [#allocation2], 12
    %v759 = vld [vmem:[%s758] sm:$0x3]
    %761 = vrot.lane.b32.xlu0 %v744, 48
    %v762 = vpop.permute.xlu0 %761
    %v764 = vsel %vm51, %v759, %v762
    %v766 = vsel %vm59, %v764, 0
    %768 = vmatprep.subr.mxu0 0.0
    %769 = vmatpush1.msra.mxu0 %v43
    %770 = vmatprep.subr.mxu0 0.0
    %771 = vmatpush1.msra.mxu0 %v44
    %772 = vmatprep.subr.mxu0 0.0
    %773 = vmatpush1.msra.mxu0 %v45
    %774 = vmatprep.subr.mxu0 0.0
    %775 = vmatpush1.msra.mxu0 %v46
    %776 = vmatprep.subr.mxu0 0.0
    %777 = vmatpush1.msra.mxu0 %v47
    %778 = vmatprep.subr.mxu0 0.0
    %779 = vmatpush1.msra.mxu0 %v48
    %780 = vmatprep.subr.mxu0 0.0
    %781 = vmatpush1.msra.mxu0 0.0
    %782 = vmatprep.subr.mxu0 0.0
    %783 = vmatpush1.msra.mxu0 0.0
    %784 = vmatprep.subr.mxu0 0.0
    %785 = vmatpush1.msra.mxu0 0.0
    %786 = vmatprep.subr.mxu0 0.0
    %787 = vmatpush1.msra.mxu0 0.0
    %788 = vmatprep.subr.mxu0 0.0
    %789 = vmatpush1.msra.mxu0 0.0
    %790 = vmatprep.subr.mxu0 0.0
    %791 = vmatpush1.msra.mxu0 0.0
    %792 = vmatprep.subr.mxu0 0.0
    %793 = vmatpush1.msra.mxu0 0.0
    %794 = vmatprep.subr.mxu0 0.0
    %795 = vmatpush1.msra.mxu0 0.0
    %796 = vmatprep.subr.mxu0 0.0
    %797 = vmatpush1.msra.mxu0 0.0
    %798 = vmatprep.subr.mxu0 0.0
    %799 = vmatpush1.msra.mxu0 0.0
    %800 = vmatprep.subr.mxu0 0.0
    %801 = vmatpush1.msra.mxu0 0.0
    %802 = vmatprep.subr.mxu0 0.0
    %803 = vmatpush1.msra.mxu0 0.0
    %804 = vmatprep.subr.mxu0 0.0
    %805 = vmatpush1.msra.mxu0 0.0
    %806 = vmatprep.subr.mxu0 0.0
    %807 = vmatpush1.msra.mxu0 0.0
    %808 = vmatprep.subr.mxu0 0.0
    %809 = vmatpush1.msra.mxu0 0.0
    %810 = vmatprep.subr.mxu0 0.0
    %811 = vmatpush1.msra.mxu0 0.0
    %812 = vmatprep.subr.mxu0 0.0
    %813 = vmatpush1.msra.mxu0 0.0
    %814 = vmatprep.subr.mxu0 0.0
    %815 = vmatpush1.msra.mxu0 0.0
    %816 = vmatprep.subr.mxu0 0.0
    %817 = vmatpush1.msra.mxu0 0.0
    %818 = vmatprep.subr.mxu0 0.0
    %819 = vmatpush1.msra.mxu0 0.0
    %820 = vmatprep.subr.mxu0 0.0
    %821 = vmatpush1.msra.mxu0 0.0
    %822 = vmatprep.subr.mxu0 0.0
    %823 = vmatpush1.msra.mxu0 0.0
    %824 = vmatprep.subr.mxu0 0.0
    %825 = vmatpush1.msra.mxu0 0.0
    %826 = vmatprep.subr.mxu0 0.0
    %827 = vmatpush1.msra.mxu0 0.0
    %828 = vmatprep.subr.mxu0 0.0
    %829 = vmatpush1.msra.mxu0 0.0
    %830 = vmatprep.subr.mxu0 0.0
    %831 = vmatpush1.msra.mxu0 0.0
    %832 = vmatprep.mubr.f32.mxu0 0.0
    %833 = vmatmul.mubr.f32.gmra.mrb[0].mxu0 %v766
    %v834 = vpop.f32.mrb[0].mxu0
    %v835 = vadd.f32 %v57, %v834
    %v836 = vpop.f32.mrb[0].mxu0
    %837 = vdwg.mxu0
    %v838 = vxor.u32 %v835, 2147483648
    %v839 = vmul.f32 %v838, 1.442695
    %v840 = vpow.pop %v839
    %v841 = vadd.f32 %v840, 1.0
    %v842 = vrcp.pop %v841
    %v843 = vmul.f32 1.0, %v842
    %v844 = vtanh.pop %v835
    %v845 = vmul.f32 %v843, %v738
    %847 = vrot.lane.b32.xlu0 %v844, 64
    %v848 = vpop.permute.xlu0 %847
    %v850 = vmul.f32 %v843, %v848
    %852 = vrot.lane.b32.xlu0 %v850, 32
    %v853 = vpop.permute.xlu0 %852
    %v855 = vadd.f32 %v845, %v853
    %v856 = vtanh.pop %v855
    %858 = vrot.lane.b32.xlu0 %v856, 64
    %v859 = vpop.permute.xlu0 %858
    %v861 = vmul.f32 %v843, %v859
    %v862 = vsel %vm157, %v861, 0.0
    %v863 = vrot.slane %v862, 4
    %v864 = vadd.f32 %v862, %v863
    %v865 = vrot.slane %v864, 2
    %v866 = vadd.f32 %v864, %v865
    %v867 = vrot.slane %v866, 1
    %v868 = vadd.f32 %v866, %v867
    %v869 = vmul.f32 %v868, %v165
    %871 = vrot.lane.b32.xlu0 %v869, 32
    %v872 = vpop.permute.xlu0 %871
    %874 = vst.msk [vmem:[#allocation7 + $0x6] sm:$0x1] %vm171, %v872
    %s875 = scalar_lea.vmem [#allocation2], 14
    %v876 = vld [vmem:[%s875] sm:$0x3]
    %878 = vrot.lane.b32.xlu0 %v861, 48
    %v879 = vpop.permute.xlu0 %878
    %v881 = vsel %vm51, %v876, %v879
    %v883 = vsel %vm59, %v881, 0
    %885 = vmatprep.subr.mxu0 0.0
    %886 = vmatpush1.msra.mxu0 %v43
    %887 = vmatprep.subr.mxu0 0.0
    %888 = vmatpush1.msra.mxu0 %v44
    %889 = vmatprep.subr.mxu0 0.0
    %890 = vmatpush1.msra.mxu0 %v45
    %891 = vmatprep.subr.mxu0 0.0
    %892 = vmatpush1.msra.mxu0 %v46
    %893 = vmatprep.subr.mxu0 0.0
    %894 = vmatpush1.msra.mxu0 %v47
    %895 = vmatprep.subr.mxu0 0.0
    %896 = vmatpush1.msra.mxu0 %v48
    %897 = vmatprep.subr.mxu0 0.0
    %898 = vmatpush1.msra.mxu0 0.0
    %899 = vmatprep.subr.mxu0 0.0
    %900 = vmatpush1.msra.mxu0 0.0
    %901 = vmatprep.subr.mxu0 0.0
    %902 = vmatpush1.msra.mxu0 0.0
    %903 = vmatprep.subr.mxu0 0.0
    %904 = vmatpush1.msra.mxu0 0.0
    %905 = vmatprep.subr.mxu0 0.0
    %906 = vmatpush1.msra.mxu0 0.0
    %907 = vmatprep.subr.mxu0 0.0
    %908 = vmatpush1.msra.mxu0 0.0
    %909 = vmatprep.subr.mxu0 0.0
    %910 = vmatpush1.msra.mxu0 0.0
    %911 = vmatprep.subr.mxu0 0.0
    %912 = vmatpush1.msra.mxu0 0.0
    %913 = vmatprep.subr.mxu0 0.0
    %914 = vmatpush1.msra.mxu0 0.0
    %915 = vmatprep.subr.mxu0 0.0
    %916 = vmatpush1.msra.mxu0 0.0
    %917 = vmatprep.subr.mxu0 0.0
    %918 = vmatpush1.msra.mxu0 0.0
    %919 = vmatprep.subr.mxu0 0.0
    %920 = vmatpush1.msra.mxu0 0.0
    %921 = vmatprep.subr.mxu0 0.0
    %922 = vmatpush1.msra.mxu0 0.0
    %923 = vmatprep.subr.mxu0 0.0
    %924 = vmatpush1.msra.mxu0 0.0
    %925 = vmatprep.subr.mxu0 0.0
    %926 = vmatpush1.msra.mxu0 0.0
    %927 = vmatprep.subr.mxu0 0.0
    %928 = vmatpush1.msra.mxu0 0.0
    %929 = vmatprep.subr.mxu0 0.0
    %930 = vmatpush1.msra.mxu0 0.0
    %931 = vmatprep.subr.mxu0 0.0
    %932 = vmatpush1.msra.mxu0 0.0
    %933 = vmatprep.subr.mxu0 0.0
    %934 = vmatpush1.msra.mxu0 0.0
    %935 = vmatprep.subr.mxu0 0.0
    %936 = vmatpush1.msra.mxu0 0.0
    %937 = vmatprep.subr.mxu0 0.0
    %938 = vmatpush1.msra.mxu0 0.0
    %939 = vmatprep.subr.mxu0 0.0
    %940 = vmatpush1.msra.mxu0 0.0
    %941 = vmatprep.subr.mxu0 0.0
    %942 = vmatpush1.msra.mxu0 0.0
    %943 = vmatprep.subr.mxu0 0.0
    %944 = vmatpush1.msra.mxu0 0.0
    %945 = vmatprep.subr.mxu0 0.0
    %946 = vmatpush1.msra.mxu0 0.0
    %947 = vmatprep.subr.mxu0 0.0
    %948 = vmatpush1.msra.mxu0 0.0
    %949 = vmatprep.mubr.f32.mxu0 0.0
    %950 = vmatmul.mubr.f32.gmra.mrb[0].mxu0 %v883
    %v951 = vpop.f32.mrb[0].mxu0
    %v952 = vadd.f32 %v57, %v951
    %v953 = vpop.f32.mrb[0].mxu0
    %954 = vdwg.mxu0
    %v955 = vxor.u32 %v952, 2147483648
    %v956 = vmul.f32 %v955, 1.442695
    %v957 = vpow.pop %v956
    %v958 = vadd.f32 %v957, 1.0
    %v959 = vrcp.pop %v958
    %v960 = vmul.f32 1.0, %v959
    %v961 = vtanh.pop %v952
    %v962 = vmul.f32 %v960, %v855
    %964 = vrot.lane.b32.xlu0 %v961, 64
    %v965 = vpop.permute.xlu0 %964
    %v967 = vmul.f32 %v960, %v965
    %969 = vrot.lane.b32.xlu0 %v967, 32
    %v970 = vpop.permute.xlu0 %969
    %v972 = vadd.f32 %v962, %v970
    %v973 = vtanh.pop %v972
    %975 = vrot.lane.b32.xlu0 %v973, 64
    %v976 = vpop.permute.xlu0 %975
    %v978 = vmul.f32 %v960, %v976
    %v979 = vsel %vm157, %v978, 0.0
    %v980 = vrot.slane %v979, 4
    %v981 = vadd.f32 %v979, %v980
    %v982 = vrot.slane %v981, 2
    %v983 = vadd.f32 %v981, %v982
    %v984 = vrot.slane %v983, 1
    %v985 = vadd.f32 %v983, %v984
    %v986 = vmul.f32 %v985, %v165
    %988 = vrot.lane.b32.xlu0 %v986, 32
    %v989 = vpop.permute.xlu0 %988
    %991 = vst.msk [vmem:[#allocation7 + $0x7] sm:$0x1] %vm171, %v989
    // Predicated region
    $region22: #{tpu_custom_call.1} parent=1 // pred_check
      _
    $region23: #{tpu_custom_call.1} parent=1 // pred_check_branch
      %993 = sbr.rel (0) target = $region25
    $region24: #{tpu_custom_call.1} parent=1 // pred_region
      %s995 = ssub.s32 128, 128
      %996 = vsyncadd [#allocation4], %s995
      %s998 = sshll.u32 [#allocation7], 4
      %s999 = int_to_ptr.vmem [resolvable:$true] %s998
      %1001 = dma.vmem_to_hbm [thread:$0]  %s999, 128, %s3, [#allocation4]
    $region25: #{tpu_custom_call.1} parent=1 // pred_fallthru
      _
    // Predicated region
    $region26: #{tpu_custom_call.1} parent=1 // pred_check
      _
    $region27: #{tpu_custom_call.1} parent=1 // pred_check_branch
      %1003 = sbr.rel (0) target = $region29
    $region28: #{tpu_custom_call.1} parent=1 // pred_region
      %1004 = dma.done [#allocation4], 128
    $region29: #{tpu_custom_call.1} parent=1 // pred_fallthru
      _
    %1005 = vsyncpa [#allocation3], 1
    %1006 = vsyncpa [#allocation6], 1
    %1007 = vsyncpa [#allocation4], 1

</llo_original>
